<compile_context>
chip_gen: v5e
topology: v5e:2x2
jax: 0.10.0
libtpu: 0.0.40
codegen_flags: <defaults>
</compile_context>

<pallas_src>
import jax
import jax.numpy as jnp
from jax.experimental import pallas as pl
from jax.experimental.pallas import tpu as pltpu

N = 8            # batch (fixed by the module's reshape(8,1,8,8))
H = W = 8
OH = OW = 7      # 8 - 2 + 1
P = OH * OW      # 49 spatial output positions per conv channel
K = 4            # 2x2 kernel taps
C1 = 10          # conv1 output channels
FLAT = C1 * P    # 490 (torch NCHW flatten order: index = c*P + p)
FLAT_PAD = 512   # 490 padded up to a lane-friendly multiple of 128
OUT = 10         # fc2 output features
IN_FLAT = H * W  # 64


def cnn2_kernel(x_ref, w1_ref, b1_ref, w2_ref, b2_ref, o_ref):
    """Fused conv1(+bias)+relu and fc2(+bias) as two MXU matmuls.

    x_ref:  (N, 64)        VMEM  flattened input images
    w1_ref: (64, FLAT_PAD) VMEM  folded im2col*conv1 weight (zero-padded cols)
    b1_ref: (1, FLAT_PAD)  VMEM  per-position conv1 bias (zero-padded cols)
    w2_ref: (FLAT_PAD, OUT) VMEM fc2.weight^T, zero-padded rows
    b2_ref: (1, OUT)       VMEM  fc2.bias
    o_ref:  (N, OUT)       VMEM
    """
    # conv1 + bias: one lane-dense (8,64)@(64,512) MXU matmul.
    hidden = jnp.dot(x_ref[...], w1_ref[...],
                     preferred_element_type=jnp.float32) + b1_ref[...]
    # F.max_pool2d(kernel_size=1) is an identity op; ReLU on the VPU.
    hidden = jnp.maximum(hidden, 0.0)
    # TODO(synk): F.dropout(training=True) is stochastic (zero + 1/(1-p) scale);
    # implemented as the deterministic eval-mode identity. A training-mode
    # variant would use pltpu.prng_seed/prng_random_bits with a seed argument.
    # fc2 + bias: one (8,512)@(512,10) MXU matmul.
    o_ref[...] = jnp.dot(hidden, w2_ref[...],
                         preferred_element_type=jnp.float32) + b2_ref[...]


def prepare_params(conv1_w, conv1_b, fc2_w, fc2_b):
    """One-time weight folding/repacking (hoisted off the per-call hot path).

    Folds im2col + conv1 into a dense (64, 512) matrix so the kernel never
    touches shifted image planes, and repacks fc2 as a zero-padded (512, OUT)
    slab (dense DMA rows, exact-zero padding => no numerical change).
    """
    conv1_w = jnp.asarray(conv1_w, jnp.float32)          # (C1, 1, 2, 2)
    conv1_b = jnp.asarray(conv1_b, jnp.float32)          # (C1,)
    fc2_w = jnp.asarray(fc2_w, jnp.float32)              # (OUT, FLAT)
    fc2_b = jnp.asarray(fc2_b, jnp.float32)              # (OUT,)

    # Selection tensor S[q, p, k] = 1 if flat input pixel q feeds tap k of
    # conv output position p (p = oi*OW + oj, k = ki*2 + kj).
    p_idx = jnp.arange(P)
    oi = p_idx // OW
    oj = p_idx % OW
    ki = jnp.array([0, 0, 1, 1])
    kj = jnp.array([0, 1, 0, 1])
    q_idx = (oi[:, None] + ki[None, :]) * W + (oj[:, None] + kj[None, :])  # (P, K)
    S = (jnp.arange(IN_FLAT)[:, None, None] == q_idx[None, :, :]).astype(jnp.float32)

    w1_taps = conv1_w.reshape(C1, K)                     # row-major (ki,kj) -> k
    # W1_eff[q, c*P + p] = sum_k S[q,p,k] * conv1_w[c, k]
    w1_block = jnp.einsum('qpk,ck->qcp', S, w1_taps).reshape(IN_FLAT, FLAT)
    w1_eff = jnp.pad(w1_block, ((0, 0), (0, FLAT_PAD - FLAT)))           # (64, 512)
    b1_eff = jnp.pad(jnp.repeat(conv1_b, P), (0, FLAT_PAD - FLAT))
    b1_eff = b1_eff.reshape(1, FLAT_PAD)                                 # (1, 512)

    # fc2: (OUT, 490) -> transpose -> zero-pad rows 490..511 -> (512, OUT).
    w2_packed = jnp.pad(fc2_w.T, ((0, FLAT_PAD - FLAT), (0, 0)))         # (512, 10)
    b2 = fc2_b.reshape(1, OUT)
    return w1_eff, b1_eff, w2_packed, b2


_VMEM = pl.BlockSpec(memory_space=pltpu.MemorySpace.VMEM)


@jax.jit
def cnn2_forward(x, packed):
    w1_eff, b1_eff, w2_packed, b2 = packed
    # Only per-call glue: cast + flatten of the input (layout-preserving).
    x_flat = jnp.asarray(x, jnp.float32).reshape(N, IN_FLAT)
    # flops: 2*8*64*512 + 2*8*512*10 ~= 0.61 MFLOP;
    # bytes: x 2K + W1 131K + b1 2K + W2 20.5K + b2/out ~0.4K ~= 156 KB.
    cost = pl.CostEstimate(flops=610_000, transcendentals=0,
                           bytes_accessed=156_000)
    return pl.pallas_call(
        cnn2_kernel,
        out_shape=jax.ShapeDtypeStruct((N, OUT), jnp.float32),
        in_specs=[_VMEM, _VMEM, _VMEM, _VMEM, _VMEM],
        out_specs=_VMEM,
        cost_estimate=cost,
    )(x_flat, w1_eff, b1_eff, w2_packed, b2)


def reference(x, conv1_w, conv1_b, fc2_w, fc2_b):
    """Pure-JAX reference matching the PyTorch forward (eval-mode dropout)."""
    x = jnp.asarray(x, jnp.float32).reshape(N, 1, H, W)
    xs = x[:, 0]
    conv = jnp.zeros((N, C1, OH, OW), jnp.float32)
    for ki in range(2):
        for kj in range(2):
            conv = conv + conv1_w[None, :, 0, ki, kj, None, None] * \
                xs[:, None, ki:ki + OH, kj:kj + OW]
    conv = conv + conv1_b[None, :, None, None]
    conv = jnp.maximum(conv, 0.0)          # relu (max_pool2d k=1 is identity)
    flat = conv.reshape(N, FLAT)           # NCHW flatten, same as torch Flatten
    return flat @ fc2_w.T + fc2_b


if __name__ == "__main__":
    key = jax.random.PRNGKey(0)
    k_x, k_w1, k_b1, k_w2, k_b2 = jax.random.split(key, 5)

    # Deterministic synthetic parameters (shapes from CNN2.__init__).
    conv1_w = jax.random.normal(k_w1, (C1, 1, 2, 2), jnp.float32) * 0.5
    conv1_b = jax.random.normal(k_b1, (C1,), jnp.float32) * 0.1
    fc2_w = jax.random.normal(k_w2, (OUT, FLAT), jnp.float32) * 0.05
    fc2_b = jax.random.normal(k_b2, (OUT,), jnp.float32) * 0.1
    # (conv2, conv2_drop, fc1 exist in __init__ but are unused in forward.)

    x = jax.random.normal(k_x, (N, 1, H, W), jnp.float32)

    packed = prepare_params(conv1_w, conv1_b, fc2_w, fc2_b)  # one-time fold
    y = cnn2_forward(x, packed)
    y = jax.block_until_ready(y)

    y_ref = reference(x, conv1_w, conv1_b, fc2_w, fc2_b)
    assert y.shape == (N, OUT)
    assert jnp.allclose(y, y_ref, atol=1e-3, rtol=1e-3), (
        f"max abs diff {jnp.max(jnp.abs(y - y_ref))}")

    print("KERNEL_OK")
</pallas_src>

<mosaic_0001>
module attributes {stable_mosaic.version = 11 : i64} {
  func.func @cnn2_kernel(%arg0: memref<8x64xf32, #tpu.memory_space<vmem>>, %arg1: memref<64x512xf32, #tpu.memory_space<vmem>>, %arg2: memref<1x512xf32, #tpu.memory_space<vmem>>, %arg3: memref<512x10xf32, #tpu.memory_space<vmem>>, %arg4: memref<1x10xf32, #tpu.memory_space<vmem>>, %arg5: memref<8x10xf32, #tpu.memory_space<vmem>>) attributes {dimension_semantics = [], scalar_prefetch = 0 : i64, scratch_operands = 0 : i64, tpu.core_type = #tpu.core_type<tc>} {
    %c0 = arith.constant 0 : index
    %c0_0 = arith.constant 0 : index
    %0 = vector.load %arg0[%c0, %c0_0] : memref<8x64xf32, #tpu.memory_space<vmem>>, vector<8x64xf32>
    %c0_1 = arith.constant 0 : index
    %c0_2 = arith.constant 0 : index
    %1 = vector.load %arg1[%c0_1, %c0_2] : memref<64x512xf32, #tpu.memory_space<vmem>>, vector<64x512xf32>
    %cst = arith.constant dense<0.000000e+00> : vector<8x512xf32>
    %2 = tpu.matmul %0, %1, %cst {dimension_numbers = #tpu.dot_dimension_numbers<[1], [0], [0], [1], [0, 0, 1, 1], [], []>} : vector<8x64xf32>, vector<64x512xf32>, vector<8x512xf32> -> vector<8x512xf32>
    %c0_3 = arith.constant 0 : index
    %c0_4 = arith.constant 0 : index
    %3 = vector.load %arg2[%c0_3, %c0_4] : memref<1x512xf32, #tpu.memory_space<vmem>>, vector<1x512xf32>
    %4 = vector.broadcast %3 : vector<1x512xf32> to vector<8x512xf32>
    %5 = arith.addf %2, %4 : vector<8x512xf32>
    %cst_5 = arith.constant 0.000000e+00 : f32
    %6 = vector.broadcast %cst_5 : f32 to vector<8x512xf32>
    %7 = arith.maximumf %5, %6 : vector<8x512xf32>
    %c0_6 = arith.constant 0 : index
    %c0_7 = arith.constant 0 : index
    %8 = vector.load %arg3[%c0_6, %c0_7] : memref<512x10xf32, #tpu.memory_space<vmem>>, vector<512x10xf32>
    %cst_8 = arith.constant dense<0.000000e+00> : vector<8x10xf32>
    %9 = tpu.matmul %7, %8, %cst_8 {dimension_numbers = #tpu.dot_dimension_numbers<[1], [0], [0], [1], [0, 0, 1, 1], [], []>} : vector<8x512xf32>, vector<512x10xf32>, vector<8x10xf32> -> vector<8x10xf32>
    %c0_9 = arith.constant 0 : index
    %c0_10 = arith.constant 0 : index
    %10 = vector.load %arg4[%c0_9, %c0_10] : memref<1x10xf32, #tpu.memory_space<vmem>>, vector<1x10xf32>
    %11 = vector.broadcast %10 : vector<1x10xf32> to vector<8x10xf32>
    %12 = arith.addf %9, %11 : vector<8x10xf32>
    %c0_11 = arith.constant 0 : index
    %c0_12 = arith.constant 0 : index
    %13 = vector.load %arg5[%c0_11, %c0_12] : memref<8x10xf32, #tpu.memory_space<vmem>>, vector<8x10xf32>
    tpu.vector_store %arg5[%c0_11, %c0_12], %12 {strides = array<i32>} : memref<8x10xf32, #tpu.memory_space<vmem>>, vector<8x10xf32>,
    return
  }
}

</mosaic_0001>

<llo_original>
// kernel: cnn2_forward.1
$region0: #{cnn2_forward.1}
  #allocation0 [shape = 'u32[]', space=smem, size = 0x4, offset = 0x4, fixed_abs, tag = 'smem constant byte address 0x4 - core index']
  #allocation1 [shape = 'u32[72,128]{1,0:T(1,128)}', space=vmem, size = 0x9000, scoped, tag = 'internal scratch']
  %s0 = inlined_call_operand.vmem [shape: f32[8,64], index: 0, kind: input, shape index: {}]
  %s1 = inlined_call_operand.vmem [shape: f32[64,512], index: 1, kind: input, shape index: {}]
  %s2 = inlined_call_operand.vmem [shape: f32[1,512], index: 2, kind: input, shape index: {}]
  %s3 = inlined_call_operand.vmem [shape: f32[512,10], index: 3, kind: input, shape index: {}]
  %s4 = inlined_call_operand.vmem [shape: f32[1,10], index: 4, kind: input, shape index: {}]
  %s5 = inlined_call_operand.hbm [shape: f32[8,10], index: 5, kind: output, shape index: {}]
  %s6 = sld [smem:[#allocation0]]
  $region30: #{cnn2_forward.1} parent=0
    _
  %s8 = ssub.s32 1, %s6
  %s9 = scalar_select 0, %s8, %s6
  $region1: #{cnn2_forward.1} parent=0
    #allocation2 [shape = 'u8[4096]{0}', space=vmem, size = 0x1000, scoped, tag = 'output window, operand 0, single buffered']
    #allocation3 [shape = 's32[1]{0}', space=sflag, size = 0x4, scoped, tag = 'scoped memory for cnn2_forward.1']
    %10 = vsyncpa [#allocation3], 0
    // Predicated region
    $region2: #{cnn2_forward.1} parent=1 // pred_check
      _
    $region3: #{cnn2_forward.1} parent=1 // pred_check_branch
      %12 = sbr.rel (0) target = $region5
    $region4: #{cnn2_forward.1} parent=1 // pred_region
      _
    $region5: #{cnn2_forward.1} parent=1 // pred_fallthru
      _
    // Predicated region
    $region6: #{cnn2_forward.1} parent=1 // pred_check
      _
    $region7: #{cnn2_forward.1} parent=1 // pred_check_branch
      %14 = sbr.rel (0) target = $region9
    $region8: #{cnn2_forward.1} parent=1 // pred_region
      _
    $region9: #{cnn2_forward.1} parent=1 // pred_fallthru
      _
    // Predicated region
    $region10: #{cnn2_forward.1} parent=1 // pred_check
      _
    $region11: #{cnn2_forward.1} parent=1 // pred_check_branch
      %16 = sbr.rel (0) target = $region13
    $region12: #{cnn2_forward.1} parent=1 // pred_region
      _
    $region13: #{cnn2_forward.1} parent=1 // pred_fallthru
      _
    // Predicated region
    $region14: #{cnn2_forward.1} parent=1 // pred_check
      _
    $region15: #{cnn2_forward.1} parent=1 // pred_check_branch
      %18 = sbr.rel (0) target = $region17
    $region16: #{cnn2_forward.1} parent=1 // pred_region
      _
    $region17: #{cnn2_forward.1} parent=1 // pred_fallthru
      _
    // Predicated region
    $region18: #{cnn2_forward.1} parent=1 // pred_check
      _
    $region19: #{cnn2_forward.1} parent=1 // pred_check_branch
      %20 = sbr.rel (0) target = $region21
    $region20: #{cnn2_forward.1} parent=1 // pred_region
      _
    $region21: #{cnn2_forward.1} parent=1 // pred_fallthru
      _
    %v21 = vld [vmem:[%s0] sm:$0xff]
    %v22 = vld [vmem:[%s1] sm:$0xff]
    %v23 = vld [vmem:[%s1 + $0x8] sm:$0xff]
    %v24 = vld [vmem:[%s1 + $0x10] sm:$0xff]
    %v25 = vld [vmem:[%s1 + $0x18] sm:$0xff]
    %v26 = vld [vmem:[%s1 + $0x20] sm:$0xff]
    %v27 = vld [vmem:[%s1 + $0x28] sm:$0xff]
    %v28 = vld [vmem:[%s1 + $0x30] sm:$0xff]
    %v29 = vld [vmem:[%s1 + $0x38] sm:$0xff]
    %v30 = vld [vmem:[%s1 + $0x40] sm:$0xff]
    %v31 = vld [vmem:[%s1 + $0x48] sm:$0xff]
    %v32 = vld [vmem:[%s1 + $0x50] sm:$0xff]
    %v33 = vld [vmem:[%s1 + $0x58] sm:$0xff]
    %v34 = vld [vmem:[%s1 + $0x60] sm:$0xff]
    %v35 = vld [vmem:[%s1 + $0x68] sm:$0xff]
    %v36 = vld [vmem:[%s1 + $0x70] sm:$0xff]
    %v37 = vld [vmem:[%s1 + $0x78] sm:$0xff]
    %v38 = vld [vmem:[%s1 + $0x80] sm:$0xff]
    %v39 = vld [vmem:[%s1 + $0x88] sm:$0xff]
    %v40 = vld [vmem:[%s1 + $0x90] sm:$0xff]
    %v41 = vld [vmem:[%s1 + $0x98] sm:$0xff]
    %v42 = vld [vmem:[%s1 + $0xa0] sm:$0xff]
    %v43 = vld [vmem:[%s1 + $0xa8] sm:$0xff]
    %v44 = vld [vmem:[%s1 + $0xb0] sm:$0xff]
    %v45 = vld [vmem:[%s1 + $0xb8] sm:$0xff]
    %v46 = vld [vmem:[%s1 + $0xc0] sm:$0xff]
    %v47 = vld [vmem:[%s1 + $0xc8] sm:$0xff]
    %v48 = vld [vmem:[%s1 + $0xd0] sm:$0xff]
    %v49 = vld [vmem:[%s1 + $0xd8] sm:$0xff]
    %v50 = vld [vmem:[%s1 + $0xe0] sm:$0xff]
    %v51 = vld [vmem:[%s1 + $0xe8] sm:$0xff]
    %v52 = vld [vmem:[%s1 + $0xf0] sm:$0xff]
    %v53 = vld [vmem:[%s1 + $0xf8] sm:$0xff]
    %v54 = vld [vmem:[%s2] sm:$0xf]
    %v56 = vperm.slane %v54, 0
    %v57 = vperm.slane %v54, 1
    %v58 = vperm.slane %v54, 2
    %v59 = vperm.slane %v54, 3
    %vm64 = vcmask 523264
    %v66 = vsel %vm64, %v21, 0
    %68 = vmatpush.msra.mxu0 0.0
    %69 = vmatpush.msra.mxu0 0.0
    %70 = vmatpush.msra.mxu0 0.0
    %71 = vmatpush.msra.mxu0 0.0
    %72 = vmatpush.msra.mxu0 0.0
    %73 = vmatpush.msra.mxu0 0.0
    %74 = vmatpush.msra.mxu0 0.0
    %75 = vmatpush.msra.mxu0 0.0
    %76 = vmatpush.msra.mxu0 %v50
    %77 = vmatpush.msra.mxu0 %v46
    %78 = vmatpush.msra.mxu0 %v42
    %79 = vmatpush.msra.mxu0 %v38
    %80 = vmatpush.msra.mxu0 %v34
    %81 = vmatpush.msra.mxu0 %v30
    %82 = vmatpush.msra.mxu0 %v26
    %83 = vmatpush.msra.mxu0 %v22
    %84 = vmatmul.f32.gmra.mxu0 %v66
    %v85 = vpop.f32.mrf.mxu0
    %v86 = vadd.f32 %v56, %v85
    %87 = vdwg.mxu0
    %88 = vmatpush.msra.mxu0 0.0
    %89 = vmatpush.msra.mxu0 0.0
    %90 = vmatpush.msra.mxu0 0.0
    %91 = vmatpush.msra.mxu0 0.0
    %92 = vmatpush.msra.mxu0 0.0
    %93 = vmatpush.msra.mxu0 0.0
    %94 = vmatpush.msra.mxu0 0.0
    %95 = vmatpush.msra.mxu0 0.0
    %96 = vmatpush.msra.mxu0 %v51
    %97 = vmatpush.msra.mxu0 %v47
    %98 = vmatpush.msra.mxu0 %v43
    %99 = vmatpush.msra.mxu0 %v39
    %100 = vmatpush.msra.mxu0 %v35
    %101 = vmatpush.msra.mxu0 %v31
    %102 = vmatpush.msra.mxu0 %v27
    %103 = vmatpush.msra.mxu0 %v23
    %104 = vmatmul.f32.gmra.mxu0 %v66
    %v105 = vpop.f32.mrf.mxu0
    %v106 = vadd.f32 %v57, %v105
    %107 = vdwg.mxu0
    %108 = vmatpush.msra.mxu0 0.0
    %109 = vmatpush.msra.mxu0 0.0
    %110 = vmatpush.msra.mxu0 0.0
    %111 = vmatpush.msra.mxu0 0.0
    %112 = vmatpush.msra.mxu0 0.0
    %113 = vmatpush.msra.mxu0 0.0
    %114 = vmatpush.msra.mxu0 0.0
    %115 = vmatpush.msra.mxu0 0.0
    %116 = vmatpush.msra.mxu0 %v52
    %117 = vmatpush.msra.mxu0 %v48
    %118 = vmatpush.msra.mxu0 %v44
    %119 = vmatpush.msra.mxu0 %v40
    %120 = vmatpush.msra.mxu0 %v36
    %121 = vmatpush.msra.mxu0 %v32
    %122 = vmatpush.msra.mxu0 %v28
    %123 = vmatpush.msra.mxu0 %v24
    %124 = vmatmul.f32.gmra.mxu0 %v66
    %v125 = vpop.f32.mrf.mxu0
    %v126 = vadd.f32 %v58, %v125
    %127 = vdwg.mxu0
    %128 = vmatpush.msra.mxu0 0.0
    %129 = vmatpush.msra.mxu0 0.0
    %130 = vmatpush.msra.mxu0 0.0
    %131 = vmatpush.msra.mxu0 0.0
    %132 = vmatpush.msra.mxu0 0.0
    %133 = vmatpush.msra.mxu0 0.0
    %134 = vmatpush.msra.mxu0 0.0
    %135 = vmatpush.msra.mxu0 0.0
    %136 = vmatpush.msra.mxu0 %v53
    %137 = vmatpush.msra.mxu0 %v49
    %138 = vmatpush.msra.mxu0 %v45
    %139 = vmatpush.msra.mxu0 %v41
    %140 = vmatpush.msra.mxu0 %v37
    %141 = vmatpush.msra.mxu0 %v33
    %142 = vmatpush.msra.mxu0 %v29
    %143 = vmatpush.msra.mxu0 %v25
    %144 = vmatmul.f32.gmra.mxu0 %v66
    %v145 = vpop.f32.mrf.mxu0
    %v146 = vadd.f32 %v59, %v145
    %147 = vdwg.mxu0
    %v148 = vmax.f32 %v86, 0.0
    %v149 = vmax.f32 %v106, 0.0
    %v150 = vmax.f32 %v126, 0.0
    %v151 = vmax.f32 %v146, 0.0
    %v152 = vld [vmem:[%s3] sm:$0xff]
    %v153 = vld [vmem:[%s3 + $0x8] sm:$0xff]
    %v154 = vld [vmem:[%s3 + $0x10] sm:$0xff]
    %v155 = vld [vmem:[%s3 + $0x18] sm:$0xff]
    %v156 = vld [vmem:[%s3 + $0x20] sm:$0xff]
    %v157 = vld [vmem:[%s3 + $0x28] sm:$0xff]
    %v158 = vld [vmem:[%s3 + $0x30] sm:$0xff]
    %v159 = vld [vmem:[%s3 + $0x38] sm:$0xff]
    %v160 = vld [vmem:[%s3 + $0x40] sm:$0xff]
    %v161 = vld [vmem:[%s3 + $0x48] sm:$0xff]
    %v162 = vld [vmem:[%s3 + $0x50] sm:$0xff]
    %v163 = vld [vmem:[%s3 + $0x58] sm:$0xff]
    %v164 = vld [vmem:[%s3 + $0x60] sm:$0xff]
    %v165 = vld [vmem:[%s3 + $0x68] sm:$0xff]
    %v166 = vld [vmem:[%s3 + $0x70] sm:$0xff]
    %v167 = vld [vmem:[%s3 + $0x78] sm:$0xff]
    %v168 = vld [vmem:[%s3 + $0x80] sm:$0xff]
    %v169 = vld [vmem:[%s3 + $0x88] sm:$0xff]
    %v170 = vld [vmem:[%s3 + $0x90] sm:$0xff]
    %v171 = vld [vmem:[%s3 + $0x98] sm:$0xff]
    %v172 = vld [vmem:[%s3 + $0xa0] sm:$0xff]
    %v173 = vld [vmem:[%s3 + $0xa8] sm:$0xff]
    %v174 = vld [vmem:[%s3 + $0xb0] sm:$0xff]
    %v175 = vld [vmem:[%s3 + $0xb8] sm:$0xff]
    %v176 = vld [vmem:[%s3 + $0xc0] sm:$0xff]
    %v177 = vld [vmem:[%s3 + $0xc8] sm:$0xff]
    %v178 = vld [vmem:[%s3 + $0xd0] sm:$0xff]
    %v179 = vld [vmem:[%s3 + $0xd8] sm:$0xff]
    %v180 = vld [vmem:[%s3 + $0xe0] sm:$0xff]
    %v181 = vld [vmem:[%s3 + $0xe8] sm:$0xff]
    %v182 = vld [vmem:[%s3 + $0xf0] sm:$0xff]
    %v183 = vld [vmem:[%s3 + $0xf8] sm:$0xff]
    %v184 = vld [vmem:[%s3 + $0x100] sm:$0xff]
    %v185 = vld [vmem:[%s3 + $0x108] sm:$0xff]
    %v186 = vld [vmem:[%s3 + $0x110] sm:$0xff]
    %v187 = vld [vmem:[%s3 + $0x118] sm:$0xff]
    %v188 = vld [vmem:[%s3 + $0x120] sm:$0xff]
    %v189 = vld [vmem:[%s3 + $0x128] sm:$0xff]
    %v190 = vld [vmem:[%s3 + $0x130] sm:$0xff]
    %v191 = vld [vmem:[%s3 + $0x138] sm:$0xff]
    %v192 = vld [vmem:[%s3 + $0x140] sm:$0xff]
    %v193 = vld [vmem:[%s3 + $0x148] sm:$0xff]
    %v194 = vld [vmem:[%s3 + $0x150] sm:$0xff]
    %v195 = vld [vmem:[%s3 + $0x158] sm:$0xff]
    %v196 = vld [vmem:[%s3 + $0x160] sm:$0xff]
    %v197 = vld [vmem:[%s3 + $0x168] sm:$0xff]
    %v198 = vld [vmem:[%s3 + $0x170] sm:$0xff]
    %v199 = vld [vmem:[%s3 + $0x178] sm:$0xff]
    %v200 = vld [vmem:[%s3 + $0x180] sm:$0xff]
    %v201 = vld [vmem:[%s3 + $0x188] sm:$0xff]
    %v202 = vld [vmem:[%s3 + $0x190] sm:$0xff]
    %v203 = vld [vmem:[%s3 + $0x198] sm:$0xff]
    %v204 = vld [vmem:[%s3 + $0x1a0] sm:$0xff]
    %v205 = vld [vmem:[%s3 + $0x1a8] sm:$0xff]
    %v206 = vld [vmem:[%s3 + $0x1b0] sm:$0xff]
    %v207 = vld [vmem:[%s3 + $0x1b8] sm:$0xff]
    %v208 = vld [vmem:[%s3 + $0x1c0] sm:$0xff]
    %v209 = vld [vmem:[%s3 + $0x1c8] sm:$0xff]
    %v210 = vld [vmem:[%s3 + $0x1d0] sm:$0xff]
    %v211 = vld [vmem:[%s3 + $0x1d8] sm:$0xff]
    %v212 = vld [vmem:[%s3 + $0x1e0] sm:$0xff]
    %v213 = vld [vmem:[%s3 + $0x1e8] sm:$0xff]
    %v214 = vld [vmem:[%s3 + $0x1f0] sm:$0xff]
    %v215 = vld [vmem:[%s3 + $0x1f8] sm:$0xff]
    %v216 = vld [vmem:[%s4] sm:$0x1]
    %v218 = vperm.slane %v216, 0
    %220 = vmatpush.msra.mxu0 %v167
    %221 = vmatpush.msra.mxu0 %v166
    %222 = vmatpush.msra.mxu0 %v165
    %223 = vmatpush.msra.mxu0 %v164
    %224 = vmatpush.msra.mxu0 %v163
    %225 = vmatpush.msra.mxu0 %v162
    %226 = vmatpush.msra.mxu0 %v161
    %227 = vmatpush.msra.mxu0 %v160
    %228 = vmatpush.msra.mxu0 %v159
    %229 = vmatpush.msra.mxu0 %v158
    %230 = vmatpush.msra.mxu0 %v157
    %231 = vmatpush.msra.mxu0 %v156
    %232 = vmatpush.msra.mxu0 %v155
    %233 = vmatpush.msra.mxu0 %v154
    %234 = vmatpush.msra.mxu0 %v153
    %235 = vmatpush.msra.mxu0 %v152
    %236 = vmatmul.f32.gmra.mxu0 %v148
    %v237 = vpop.f32.mrf.mxu0
    %v238 = vadd.f32 %v218, %v237
    %239 = vdwg.mxu0
    %240 = vmatpush.msra.mxu0 %v183
    %241 = vmatpush.msra.mxu0 %v182
    %242 = vmatpush.msra.mxu0 %v181
    %243 = vmatpush.msra.mxu0 %v180
    %244 = vmatpush.msra.mxu0 %v179
    %245 = vmatpush.msra.mxu0 %v178
    %246 = vmatpush.msra.mxu0 %v177
    %247 = vmatpush.msra.mxu0 %v176
    %248 = vmatpush.msra.mxu0 %v175
    %249 = vmatpush.msra.mxu0 %v174
    %250 = vmatpush.msra.mxu0 %v173
    %251 = vmatpush.msra.mxu0 %v172
    %252 = vmatpush.msra.mxu0 %v171
    %253 = vmatpush.msra.mxu0 %v170
    %254 = vmatpush.msra.mxu0 %v169
    %255 = vmatpush.msra.mxu0 %v168
    %256 = vmatmul.f32.gmra.mxu0 %v149
    %v257 = vpop.f32.mrf.mxu0
    %v258 = vadd.f32 %v238, %v257
    %259 = vdwg.mxu0
    %260 = vmatpush.msra.mxu0 %v199
    %261 = vmatpush.msra.mxu0 %v198
    %262 = vmatpush.msra.mxu0 %v197
    %263 = vmatpush.msra.mxu0 %v196
    %264 = vmatpush.msra.mxu0 %v195
    %265 = vmatpush.msra.mxu0 %v194
    %266 = vmatpush.msra.mxu0 %v193
    %267 = vmatpush.msra.mxu0 %v192
    %268 = vmatpush.msra.mxu0 %v191
    %269 = vmatpush.msra.mxu0 %v190
    %270 = vmatpush.msra.mxu0 %v189
    %271 = vmatpush.msra.mxu0 %v188
    %272 = vmatpush.msra.mxu0 %v187
    %273 = vmatpush.msra.mxu0 %v186
    %274 = vmatpush.msra.mxu0 %v185
    %275 = vmatpush.msra.mxu0 %v184
    %276 = vmatmul.f32.gmra.mxu0 %v150
    %v277 = vpop.f32.mrf.mxu0
    %v278 = vadd.f32 %v258, %v277
    %279 = vdwg.mxu0
    %280 = vmatpush.msra.mxu0 %v215
    %281 = vmatpush.msra.mxu0 %v214
    %282 = vmatpush.msra.mxu0 %v213
    %283 = vmatpush.msra.mxu0 %v212
    %284 = vmatpush.msra.mxu0 %v211
    %285 = vmatpush.msra.mxu0 %v210
    %286 = vmatpush.msra.mxu0 %v209
    %287 = vmatpush.msra.mxu0 %v208
    %288 = vmatpush.msra.mxu0 %v207
    %289 = vmatpush.msra.mxu0 %v206
    %290 = vmatpush.msra.mxu0 %v205
    %291 = vmatpush.msra.mxu0 %v204
    %292 = vmatpush.msra.mxu0 %v203
    %293 = vmatpush.msra.mxu0 %v202
    %294 = vmatpush.msra.mxu0 %v201
    %295 = vmatpush.msra.mxu0 %v200
    %296 = vmatmul.f32.gmra.mxu0 %v151
    %v297 = vpop.f32.mrf.mxu0
    %v298 = vadd.f32 %v278, %v297
    %299 = vdwg.mxu0
    %vm300 = vcmask 80896
    %301 = vst.msk [vmem:[#allocation2] sm:$0xff] %vm300, %v298
    // Predicated region
    $region22: #{cnn2_forward.1} parent=1 // pred_check
      _
    $region23: #{cnn2_forward.1} parent=1 // pred_check_branch
      %303 = sbr.rel (0) target = $region25
    $region24: #{cnn2_forward.1} parent=1 // pred_region
      %305 = vsyncadd [#allocation3], 0
      %s307 = sshll.u32 [#allocation2], 4
      %s308 = int_to_ptr.vmem [resolvable:$true] %s307
      %s309 = sshll.u32 %s5, 4
      %s310 = int_to_ptr.hbm [resolvable:$true] %s309
      %312 = dma.vmem_to_hbm [thread:$0]  %s308, 128, %s310, [#allocation3]
    $region25: #{cnn2_forward.1} parent=1 // pred_fallthru
      _
    // Predicated region
    $region26: #{cnn2_forward.1} parent=1 // pred_check
      _
    $region27: #{cnn2_forward.1} parent=1 // pred_check_branch
      %314 = sbr.rel (0) target = $region29
    $region28: #{cnn2_forward.1} parent=1 // pred_region
      %316 = dma.done [#allocation3], 128
    $region29: #{cnn2_forward.1} parent=1 // pred_fallthru
      _
    %317 = vsyncpa [#allocation3], 1

</llo_original>
